<compile_context>
chip_gen: v5e
topology: v5e:2x2
jax: 0.10.0
libtpu: 0.0.40
codegen_flags: <defaults>
</compile_context>

<pallas_src>
import jax
import jax.numpy as jnp
from jax.experimental import pallas as pl
from jax.experimental.pallas import tpu as pltpu

_LANE = 128          # vreg lane count
_SUBLANE = 8         # vreg sublane count (f32)
_MAX_BLOCK_ROWS = 4096   # 4096 * 128 * 4B = 2 MiB per f32 block


def _mish_kernel(x_ref, o_ref):
    x = x_ref[...]
    # Compute dtype: stay in bf16 natively (v6e/v7x), upcast everything else.
    if x.dtype == jnp.bfloat16:
        xf = x
    else:
        xf = x.astype(jnp.float32)

    # PyTorch F.softplus uses threshold=20 (linear for x > 20); there
    # tanh(softplus(x)) == 1 to f32 precision, so y == x on that branch.
    # For x <= 20:  tanh(log1p(e^x)) == n / (n + 2)  with  n = e^x * (e^x + 2).
    t = jnp.exp(jnp.minimum(xf, xf.dtype.type(20.0)))       # <= e^20, no overflow
    n = t * (t + xf.dtype.type(2.0))
    y = xf * n * pl.reciprocal(n + xf.dtype.type(2.0), approx=True)
    y = jnp.where(xf > xf.dtype.type(20.0), xf, y)

    o_ref[...] = y.astype(o_ref.dtype)


def mish(x: jax.Array) -> jax.Array:
    """Elementwise Mish. Accepts any shape; matches torch semantics/dtype."""
    orig_shape = x.shape
    n = x.size

    # Lane/sublane-dense layout: pad to a multiple of 8*128 elements, then to a
    # multiple of the block so the grid divides exactly.
    rows0 = pl.cdiv(n, _LANE)
    rows0 = ((rows0 + _SUBLANE - 1) // _SUBLANE) * _SUBLANE
    bm = min(rows0, _MAX_BLOCK_ROWS)
    rows = ((rows0 + bm - 1) // bm) * bm
    padded_n = rows * _LANE

    flat = x.reshape(-1)
    if padded_n != n:
        flat = jnp.pad(flat, (0, padded_n - n))
    x2d = flat.reshape(rows, _LANE)

    grid = (rows // bm,)
    out = pl.pallas_call(
        _mish_kernel,
        out_shape=jax.ShapeDtypeStruct((rows, _LANE), x.dtype),
        grid_spec=pltpu.PrefetchScalarGridSpec(
            num_scalar_prefetch=0,
            grid=grid,
            in_specs=[pl.BlockSpec((bm, _LANE), lambda i: (i, 0))],
            out_specs=pl.BlockSpec((bm, _LANE), lambda i: (i, 0)),
        ),
        compiler_params=pltpu.CompilerParams(
            # Every row-block is independent: lets v7x shard across its 2 TCs.
            dimension_semantics=("parallel",),
        ),
    )(x2d)

    out_flat = out.reshape(-1)
    if padded_n != n:
        out_flat = out_flat[:n]
    return out_flat.reshape(orig_shape)


def _mish_ref(x):
    xf = x.astype(jnp.float32)
    sp = jnp.where(xf > 20.0, xf, jnp.log1p(jnp.exp(jnp.minimum(xf, 20.0))))
    return (xf * jnp.tanh(sp)).astype(x.dtype)


if __name__ == "__main__":
    key = jax.random.PRNGKey(0)
    # NCHW, consistent with PyTorch conv-style tensors feeding Mish.
    x = jax.random.normal(key, (2, 4, 16, 16), dtype=jnp.float32) * 5.0

    y = mish(x)
    jax.block_until_ready(y)

    y_ref = _mish_ref(x)
    assert y.shape == x.shape and y.dtype == x.dtype

    yf = y.astype(jnp.float32)
    rf = y_ref.astype(jnp.float32)
    # approx-reciprocal introduces ~1e-4..1e-3 relative error; well under 5e-3.
    rel_err = jnp.max(jnp.abs(yf - rf) / (1.0 + jnp.abs(rf)))
    assert rel_err < 5e-3, float(rel_err)

    print("KERNEL_OK")
</pallas_src>

<mosaic_0001>
module attributes {stable_mosaic.version = 11 : i64} {
  func.func @_mish_kernel(%arg0: i32, %arg1: memref<16x128xf32, #tpu.memory_space<vmem>>, %arg2: memref<16x128xf32, #tpu.memory_space<vmem>>) attributes {dimension_semantics = [#tpu.dimension_semantics<parallel>], iteration_bounds = array<i64: 1>, scalar_prefetch = 0 : i64, scratch_operands = 0 : i64, tpu.core_type = #tpu.core_type<tc>, window_params = [{transform_indices = @transform_0, window_bounds = array<i64: 16, 128>}, {transform_indices = @transform_1, window_bounds = array<i64: 16, 128>}]} {
    %c0 = arith.constant 0 : index
    %c0_0 = arith.constant 0 : index
    %0 = vector.load %arg1[%c0, %c0_0] : memref<16x128xf32, #tpu.memory_space<vmem>>, vector<16x128xf32>
    %cst = arith.constant 2.000000e+01 : f32
    %1 = vector.broadcast %cst : f32 to vector<16x128xf32>
    %2 = arith.minimumf %0, %1 : vector<16x128xf32>
    %3 = math.exp %2 : vector<16x128xf32>
    %cst_1 = arith.constant 2.000000e+00 : f32
    %4 = vector.broadcast %cst_1 : f32 to vector<16x128xf32>
    %5 = arith.addf %3, %4 : vector<16x128xf32>
    %6 = arith.mulf %3, %5 : vector<16x128xf32>
    %7 = arith.mulf %0, %6 : vector<16x128xf32>
    %cst_2 = arith.constant 2.000000e+00 : f32
    %8 = vector.broadcast %cst_2 : f32 to vector<16x128xf32>
    %9 = arith.addf %6, %8 : vector<16x128xf32>
    %10 = tpu.reciprocal %9 {approx = true} : vector<16x128xf32> -> vector<16x128xf32>
    %11 = arith.mulf %7, %10 : vector<16x128xf32>
    %cst_3 = arith.constant 2.000000e+01 : f32
    %12 = vector.broadcast %cst_3 : f32 to vector<16x128xf32>
    %13 = arith.cmpf ogt, %0, %12 : vector<16x128xf32>
    %14 = arith.select %13, %0, %11 : vector<16x128xi1>, vector<16x128xf32>
    %c0_4 = arith.constant 0 : index
    %c0_5 = arith.constant 0 : index
    %15 = vector.load %arg2[%c0_4, %c0_5] : memref<16x128xf32, #tpu.memory_space<vmem>>, vector<16x128xf32>
    tpu.vector_store %arg2[%c0_4, %c0_5], %14 {strides = array<i32>} : memref<16x128xf32, #tpu.memory_space<vmem>>, vector<16x128xf32>,
    return
  }
  func.func @transform_0(%arg0: i32) -> (i32, i32) {
    %c0_i32 = arith.constant 0 : i32
    %c0_i32_0 = arith.constant 0 : i32
    return %arg0, %c0_i32 : i32, i32
  }
  func.func @transform_1(%arg0: i32) -> (i32, i32) {
    %c0_i32 = arith.constant 0 : i32
    %c0_i32_0 = arith.constant 0 : i32
    return %arg0, %c0_i32 : i32, i32
  }
}

</mosaic_0001>

<llo_original>
// kernel: tpu_custom_call.1
$region0: #{tpu_custom_call.1}
  #allocation0 [shape = 'u32[]', space=smem, size = 0x4, offset = 0x4, fixed_abs, tag = 'smem constant byte address 0x4 - core index']
  #allocation1 [shape = 'u32[72,128]{1,0:T(1,128)}', space=vmem, size = 0x9000, scoped, tag = 'internal scratch']
  %s0 = inlined_call_operand.hbm [shape: f32[16,128], index: 0, kind: input, shape index: {}]
  %s1 = inlined_call_operand.hbm [shape: f32[16,128], index: 1, kind: output, shape index: {}]
  %s2 = sld [smem:[#allocation0]]
  $region18: #{tpu_custom_call.1} parent=0
    _
  %s4 = ssub.s32 1, %s2
  %s5 = scalar_select 0, %s4, %s2
  $region1: #{tpu_custom_call.1} parent=0
    #allocation2 [shape = 'u8[8192]{0}', space=vmem, size = 0x2000, scoped, tag = 'input window, operand 0, single buffered']
    #allocation3 [shape = 's32[1]{0}', space=sflag, size = 0x4, scoped, tag = 'scoped memory for tpu_custom_call.1']
    #allocation4 [shape = 's32[1]{0}', space=sflag, size = 0x4, scoped, tag = 'scoped memory for tpu_custom_call.1']
    #allocation5 [shape = 'u8[8192]{0}', space=vmem, size = 0x2000, scoped, tag = 'output window, operand 0, single buffered']
    %6 = vsyncpa [#allocation3], 0
    %7 = vsyncpa [#allocation4], 0
    // Predicated region
    $region2: #{tpu_custom_call.1} parent=1 // pred_check
      _
    $region3: #{tpu_custom_call.1} parent=1 // pred_check_branch
      %9 = sbr.rel (0) target = $region5
    $region4: #{tpu_custom_call.1} parent=1 // pred_region
      %11 = vsyncadd [#allocation3], 0
      %s12 = sshll.u32 %s0, 4
      %s13 = int_to_ptr.hbm [resolvable:$true] %s12
      %s14 = sshll.u32 [#allocation2], 4
      %s15 = int_to_ptr.vmem [resolvable:$true] %s14
      %20 = dma.hbm_to_vmem [thread:$0]  %s13, 256, %s15, [#allocation3], 128, 128, 8
    $region5: #{tpu_custom_call.1} parent=1 // pred_fallthru
      _
    // Predicated region
    $region6: #{tpu_custom_call.1} parent=1 // pred_check
      _
    $region7: #{tpu_custom_call.1} parent=1 // pred_check_branch
      %22 = sbr.rel (0) target = $region9
    $region8: #{tpu_custom_call.1} parent=1 // pred_region
      %24 = dma.done [#allocation3], 256
    $region9: #{tpu_custom_call.1} parent=1 // pred_fallthru
      _
    %v25 = vld [vmem:[#allocation2] sm:$0xff]
    %v26 = vld [vmem:[#allocation2 + $0x8] sm:$0xff]
    %v27 = vmin.f32 %v25, 20.0
    %v28 = vmin.f32 %v26, 20.0
    %v29 = vmul.f32 %v27, 1.442695
    %v30 = vpow.pop %v29
    %v31 = vmul.f32 %v28, 1.442695
    %v32 = vpow.pop %v31
    %v33 = vadd.f32 %v30, 2.0
    %v34 = vadd.f32 %v32, 2.0
    %v35 = vmul.f32 %v30, %v33
    %v36 = vmul.f32 %v32, %v34
    %v37 = vmul.f32 %v25, %v35
    %v38 = vmul.f32 %v26, %v36
    %v39 = vadd.f32 %v35, 2.0
    %v40 = vadd.f32 %v36, 2.0
    %v41 = vrcp.pop %v39
    %v42 = vrcp.pop %v40
    %v43 = vmul.f32 %v37, %v41
    %v44 = vmul.f32 %v38, %v42
    %vm45 = vcmp.gt.f32.partialorder %v25, 20.0
    %vm46 = vcmp.gt.f32.partialorder %v26, 20.0
    %v47 = vsel %vm45, %v25, %v43
    %v48 = vsel %vm46, %v26, %v44
    %49 = vst [vmem:[#allocation5] sm:$0xff] %v47
    %50 = vst [vmem:[#allocation5 + $0x8] sm:$0xff] %v48
    // Predicated region
    $region10: #{tpu_custom_call.1} parent=1 // pred_check
      _
    $region11: #{tpu_custom_call.1} parent=1 // pred_check_branch
      %52 = sbr.rel (0) target = $region13
    $region12: #{tpu_custom_call.1} parent=1 // pred_region
      %54 = vsyncadd [#allocation4], 0
      %s55 = sshll.u32 [#allocation5], 4
      %s56 = int_to_ptr.vmem [resolvable:$true] %s55
      %s57 = sshll.u32 %s1, 4
      %s58 = int_to_ptr.hbm [resolvable:$true] %s57
      %63 = dma.vmem_to_hbm [thread:$0]  %s56, 256, %s58, [#allocation4], 128, 128, 8
    $region13: #{tpu_custom_call.1} parent=1 // pred_fallthru
      _
    // Predicated region
    $region14: #{tpu_custom_call.1} parent=1 // pred_check
      _
    $region15: #{tpu_custom_call.1} parent=1 // pred_check_branch
      %65 = sbr.rel (0) target = $region17
    $region16: #{tpu_custom_call.1} parent=1 // pred_region
      %67 = dma.done [#allocation4], 256
    $region17: #{tpu_custom_call.1} parent=1 // pred_fallthru
      _
    %68 = vsyncpa [#allocation3], 1
    %69 = vsyncpa [#allocation4], 1

</llo_original>
